<compile_context>
chip_gen: v6e
topology: v6e:2x2x1
jax: 0.10.0
libtpu: 0.0.40
codegen_flags: <defaults>
</compile_context>

<pallas_src>
import functools

import jax
import jax.numpy as jnp
from jax.experimental import pallas as pl
from jax.experimental.pallas import tpu as pltpu  # noqa: F401  (TPU-specific tuning hooks)

EPS = 1e-5
NEG_PAD = -1e30  # large finite negative for padded logit lanes (no -inf arithmetic)


def ffn_kernel(x_ref, w1_ref, gamma_ref, beta_ref, w2_ref, b2_ref, o_ref):
    x = x_ref[...]                                              # [B, F]

    # fc1 (bias-free: b1 cancels exactly under batch-statistics BatchNorm).
    # [B, F] @ [F, HP]   (HP = 128 lanes, padded columns are zero)
    h = jnp.dot(x, w1_ref[...], preferred_element_type=jnp.float32)

    # BatchNorm over the batch axis (training-mode batch statistics, matching
    # what the PyTorch forward sees in train_model).  Centered two-pass
    # variance; rsqrt goes to the EUP slot.
    mean = jnp.mean(h, axis=0, keepdims=True)                   # [1, HP]
    d = h - mean
    var = jnp.mean(d * d, axis=0, keepdims=True)                # [1, HP]
    scale = gamma_ref[...] * jax.lax.rsqrt(var + EPS)
    h = jnp.maximum(d * scale + beta_ref[...], 0.0)             # BN affine + ReLU
    # Padded H lanes: w1 cols zero -> h=0, mean=0, d=0; gamma=0, beta=0 -> stays 0.

    # fc2: [B, HP] @ [HP, LP] + [1, LP].  Padded w2 rows/cols are zero and
    # padded b2 lanes are -1e30, so padded logits arrive pre-masked.
    logits = jnp.dot(h, w2_ref[...], preferred_element_type=jnp.float32) + b2_ref[...]

    # log_softmax: padded lanes contribute exp(~-1e30 - m) == 0 to the sum.
    m = jnp.max(logits, axis=-1, keepdims=True)
    lse = jnp.log(jnp.sum(jnp.exp(logits - m), axis=-1, keepdims=True)) + m
    # Lane-dense (unmasked) store of the full [B, LP] slab; padded lanes hold
    # a large finite negative and are sliced off by the wrapper.
    o_ref[...] = (logits - lse).astype(o_ref.dtype)


def _round_up(n, m):
    return pl.cdiv(n, m) * m


def prepare_params(w1, gamma, beta, w2, b2):
    """One-time (model-init) padding of parameters to dense 128-lane tiles.

    Keeping this out of the forward path removes six per-call XLA pad ops
    from a launch-latency-bound layer.  fc1's bias is intentionally not
    taken: it cancels under batch-statistics BatchNorm.
    """
    F, H = w1.shape
    L = w2.shape[1]
    HP = _round_up(H, 128)   # lane-pad hidden dim (128 is optimal on v5e too)
    LP = _round_up(L, 128)   # lane-pad class dim

    f32 = jnp.float32
    w1p = jnp.zeros((F, HP), f32).at[:, :H].set(w1.astype(f32))
    gammap = jnp.zeros((1, HP), f32).at[:, :H].set(gamma.astype(f32))
    betap = jnp.zeros((1, HP), f32).at[:, :H].set(beta.astype(f32))
    w2p = jnp.zeros((HP, LP), f32).at[:H, :L].set(w2.astype(f32))
    b2p = jnp.full((1, LP), NEG_PAD, f32).at[:, :L].set(b2.astype(f32))
    params = (w1p, gammap, betap, w2p, b2p)
    return jax.tree_util.tree_map(jax.block_until_ready, params), L


@functools.partial(jax.jit, static_argnames=("num_classes",))
def feed_forward_network(x, w1p, gammap, betap, w2p, b2p, *, num_classes):
    B, F = x.shape
    HP = w1p.shape[1]
    LP = w2p.shape[1]

    full = lambda shape: pl.BlockSpec(shape, lambda: (0,) * len(shape))

    cost = pl.CostEstimate(
        flops=2 * B * (F * HP + HP * LP),
        transcendentals=B * LP + B + HP,                       # exp + log + rsqrt
        bytes_accessed=4 * (B * F + F * HP + 2 * HP + HP * LP + LP + B * LP),
    )

    out_padded = pl.pallas_call(
        ffn_kernel,
        out_shape=jax.ShapeDtypeStruct((B, LP), jnp.float32),
        grid=(),
        in_specs=[
            full((B, F)),
            full((F, HP)),
            full((1, HP)),
            full((1, HP)),
            full((HP, LP)),
            full((1, LP)),
        ],
        out_specs=full((B, LP)),
        cost_estimate=cost,
    )(x, w1p, gammap, betap, w2p, b2p)

    # Slice the real classes back out (fused into the surrounding jit; drop it
    # entirely if the consumer can take the [B, LP] slab).
    return out_padded[:, :num_classes]


def reference(x, w1, b1, gamma, beta, w2, b2):
    h = x @ w1 + b1
    mean = jnp.mean(h, axis=0, keepdims=True)
    var = jnp.mean((h - mean) ** 2, axis=0, keepdims=True)
    h = (h - mean) / jnp.sqrt(var + EPS) * gamma + beta
    h = jnp.maximum(h, 0.0)
    logits = h @ w2 + b2
    return jax.nn.log_softmax(logits, axis=-1)


if __name__ == "__main__":
    # Synthetic sizes implied by the module:
    #   in_features = len(alphabets) * max_length -> 8 * 8 = 64
    #   hidden_size = 32
    #   out_features = len(languages) -> 16
    B, F, H, L = 8, 64, 32, 16

    key = jax.random.PRNGKey(0)
    kx, kw1, kb1, kw2, kb2 = jax.random.split(key, 5)

    x = jax.random.normal(kx, (B, F), dtype=jnp.float32)

    # Deterministic parameter init (uniform like nn.Linear, stored transposed).
    w1 = jax.random.uniform(kw1, (F, H), jnp.float32, -1.0 / F**0.5, 1.0 / F**0.5)
    b1 = jax.random.uniform(kb1, (1, H), jnp.float32, -1.0 / F**0.5, 1.0 / F**0.5)
    gamma = jnp.ones((1, H), jnp.float32)
    beta = jnp.zeros((1, H), jnp.float32)
    w2 = jax.random.uniform(kw2, (H, L), jnp.float32, -1.0 / H**0.5, 1.0 / H**0.5)
    b2 = jax.random.uniform(kb2, (1, L), jnp.float32, -1.0 / H**0.5, 1.0 / H**0.5)

    # One-time padding at model init (b1 is not needed: it cancels under BN).
    (w1p, gammap, betap, w2p, b2p), num_classes = prepare_params(w1, gamma, beta, w2, b2)

    out = feed_forward_network(x, w1p, gammap, betap, w2p, b2p, num_classes=num_classes)
    out = jax.block_until_ready(out)

    ref = reference(x, w1, b1, gamma, beta, w2, b2)
    assert out.shape == (B, L)
    assert jnp.allclose(out, ref, atol=1e-4, rtol=1e-4), "mismatch vs reference"

    print("KERNEL_OK")
</pallas_src>

<mosaic_0001>
module attributes {stable_mosaic.version = 11 : i64} {
  func.func @ffn_kernel(%arg0: memref<8x64xf32, #tpu.memory_space<vmem>>, %arg1: memref<64x128xf32, #tpu.memory_space<vmem>>, %arg2: memref<1x128xf32, #tpu.memory_space<vmem>>, %arg3: memref<1x128xf32, #tpu.memory_space<vmem>>, %arg4: memref<128x128xf32, #tpu.memory_space<vmem>>, %arg5: memref<1x128xf32, #tpu.memory_space<vmem>>, %arg6: memref<8x128xf32, #tpu.memory_space<vmem>>) attributes {dimension_semantics = [], scalar_prefetch = 0 : i64, scratch_operands = 0 : i64, tpu.core_type = #tpu.core_type<tc>} {
    %c0 = arith.constant 0 : index
    %c0_0 = arith.constant 0 : index
    %0 = vector.load %arg0[%c0, %c0_0] : memref<8x64xf32, #tpu.memory_space<vmem>>, vector<8x64xf32>
    %c0_1 = arith.constant 0 : index
    %c0_2 = arith.constant 0 : index
    %1 = vector.load %arg1[%c0_1, %c0_2] : memref<64x128xf32, #tpu.memory_space<vmem>>, vector<64x128xf32>
    %cst = arith.constant dense<0.000000e+00> : vector<8x128xf32>
    %2 = tpu.matmul %0, %1, %cst {dimension_numbers = #tpu.dot_dimension_numbers<[1], [0], [0], [1], [0, 0, 1, 1], [], []>} : vector<8x64xf32>, vector<64x128xf32>, vector<8x128xf32> -> vector<8x128xf32>
    %cst_3 = arith.constant dense<0.000000e+00> : vector<128xf32>
    %3 = vector.multi_reduction <add>, %2, %cst_3 [0] : vector<8x128xf32> to vector<128xf32>
    %4 = vector.shape_cast %3 : vector<128xf32> to vector<1x128xf32>
    %cst_4 = arith.constant 8.000000e+00 : f32
    %5 = vector.broadcast %cst_4 : f32 to vector<1x128xf32>
    %6 = arith.divf %4, %5 : vector<1x128xf32>
    %7 = vector.broadcast %6 : vector<1x128xf32> to vector<8x128xf32>
    %8 = arith.subf %2, %7 : vector<8x128xf32>
    %9 = arith.mulf %8, %8 : vector<8x128xf32>
    %cst_5 = arith.constant dense<0.000000e+00> : vector<128xf32>
    %10 = vector.multi_reduction <add>, %9, %cst_5 [0] : vector<8x128xf32> to vector<128xf32>
    %11 = vector.shape_cast %10 : vector<128xf32> to vector<1x128xf32>
    %cst_6 = arith.constant 8.000000e+00 : f32
    %12 = vector.broadcast %cst_6 : f32 to vector<1x128xf32>
    %13 = arith.divf %11, %12 : vector<1x128xf32>
    %c0_7 = arith.constant 0 : index
    %c0_8 = arith.constant 0 : index
    %14 = vector.load %arg2[%c0_7, %c0_8] : memref<1x128xf32, #tpu.memory_space<vmem>>, vector<1x128xf32>
    %cst_9 = arith.constant 9.99999974E-6 : f32
    %15 = vector.broadcast %cst_9 : f32 to vector<1x128xf32>
    %16 = arith.addf %13, %15 : vector<1x128xf32>
    %17 = math.rsqrt %16 : vector<1x128xf32>
    %18 = arith.mulf %14, %17 : vector<1x128xf32>
    %19 = vector.broadcast %18 : vector<1x128xf32> to vector<8x128xf32>
    %20 = arith.mulf %8, %19 : vector<8x128xf32>
    %c0_10 = arith.constant 0 : index
    %c0_11 = arith.constant 0 : index
    %21 = vector.load %arg3[%c0_10, %c0_11] : memref<1x128xf32, #tpu.memory_space<vmem>>, vector<1x128xf32>
    %22 = vector.broadcast %21 : vector<1x128xf32> to vector<8x128xf32>
    %23 = arith.addf %20, %22 : vector<8x128xf32>
    %cst_12 = arith.constant 0.000000e+00 : f32
    %24 = vector.broadcast %cst_12 : f32 to vector<8x128xf32>
    %25 = arith.maximumf %23, %24 : vector<8x128xf32>
    %c0_13 = arith.constant 0 : index
    %c0_14 = arith.constant 0 : index
    %26 = vector.load %arg4[%c0_13, %c0_14] : memref<128x128xf32, #tpu.memory_space<vmem>>, vector<128x128xf32>
    %cst_15 = arith.constant dense<0.000000e+00> : vector<8x128xf32>
    %27 = tpu.matmul %25, %26, %cst_15 {dimension_numbers = #tpu.dot_dimension_numbers<[1], [0], [0], [1], [0, 0, 1, 1], [], []>} : vector<8x128xf32>, vector<128x128xf32>, vector<8x128xf32> -> vector<8x128xf32>
    %c0_16 = arith.constant 0 : index
    %c0_17 = arith.constant 0 : index
    %28 = vector.load %arg5[%c0_16, %c0_17] : memref<1x128xf32, #tpu.memory_space<vmem>>, vector<1x128xf32>
    %29 = vector.broadcast %28 : vector<1x128xf32> to vector<8x128xf32>
    %30 = arith.addf %27, %29 : vector<8x128xf32>
    %cst_18 = arith.constant dense<0xFF800000> : vector<8xf32>
    %31 = vector.multi_reduction <maximumf>, %30, %cst_18 [1] : vector<8x128xf32> to vector<8xf32>
    %32 = vector.shape_cast %31 : vector<8xf32> to vector<8x1xf32>
    %33 = vector.broadcast %32 : vector<8x1xf32> to vector<8x128xf32>
    %34 = arith.subf %30, %33 : vector<8x128xf32>
    %35 = math.exp %34 : vector<8x128xf32>
    %cst_19 = arith.constant dense<0.000000e+00> : vector<8xf32>
    %36 = vector.multi_reduction <add>, %35, %cst_19 [1] : vector<8x128xf32> to vector<8xf32>
    %37 = vector.shape_cast %36 : vector<8xf32> to vector<8x1xf32>
    %38 = math.log %37 : vector<8x1xf32>
    %39 = arith.addf %38, %32 : vector<8x1xf32>
    %40 = vector.broadcast %39 : vector<8x1xf32> to vector<8x128xf32>
    %41 = arith.subf %30, %40 : vector<8x128xf32>
    %c0_20 = arith.constant 0 : index
    %c0_21 = arith.constant 0 : index
    %42 = vector.load %arg6[%c0_20, %c0_21] : memref<8x128xf32, #tpu.memory_space<vmem>>, vector<8x128xf32>
    tpu.vector_store %arg6[%c0_20, %c0_21], %41 {strides = array<i32>} : memref<8x128xf32, #tpu.memory_space<vmem>>, vector<8x128xf32>,
    return
  }
}

</mosaic_0001>

<llo_original>
// kernel: feed_forward_network.1
$region0: #{feed_forward_network.1}
  #allocation0 [shape = 'u32[]', space=smem, size = 0x4, offset = 0x4, fixed_abs, tag = 'smem constant byte address 0x4 - core index']
  #allocation1 [shape = 'u32[144,128]{1,0:T(1,128)}', space=vmem, size = 0x12000, scoped, tag = 'internal scratch']
  %s0 = inlined_call_operand.hbm [shape: f32[8,64], index: 0, kind: input, shape index: {}]
  %s1 = inlined_call_operand.hbm [shape: f32[64,128], index: 1, kind: input, shape index: {}]
  %s2 = inlined_call_operand.vmem [shape: f32[1,128], index: 2, kind: input, shape index: {}]
  %s3 = inlined_call_operand.vmem [shape: f32[1,128], index: 3, kind: input, shape index: {}]
  %s4 = inlined_call_operand.hbm [shape: f32[128,128], index: 4, kind: input, shape index: {}]
  %s5 = inlined_call_operand.vmem [shape: f32[1,128], index: 5, kind: input, shape index: {}]
  %s6 = inlined_call_operand.hbm [shape: f32[8,128], index: 6, kind: output, shape index: {}]
  %s7 = sld [smem:[#allocation0]]
  $region46: #{feed_forward_network.1} parent=0
    _
  %s9 = ssub.s32 1, %s7
  %s10 = scalar_select 0, %s9, %s7
  $region1: #{feed_forward_network.1} parent=0
    #allocation2 [shape = 'u8[4096]{0}', space=vmem, size = 0x1000, scoped, tag = 'input window, operand 0, single buffered']
    #allocation3 [shape = 's32[1]{0}', space=sflag, size = 0x4, scoped, tag = 'scoped memory for feed_forward_network.1']
    #allocation4 [shape = 's32[1]{0}', space=sflag, size = 0x4, scoped, tag = 'scoped memory for feed_forward_network.1']
    #allocation5 [shape = 'u8[32768]{0}', space=vmem, size = 0x8000, scoped, tag = 'input window, operand 1, single buffered']
    #allocation6 [shape = 's32[1]{0}', space=sflag, size = 0x4, scoped, tag = 'scoped memory for feed_forward_network.1']
    #allocation7 [shape = 'u8[65536]{0}', space=vmem, size = 0x10000, scoped, tag = 'input window, operand 4, single buffered']
    #allocation8 [shape = 'u8[4096]{0}', space=vmem, size = 0x1000, scoped, tag = 'output window, operand 0, single buffered']
    %11 = vsyncpa [#allocation3], 0
    %12 = vsyncpa [#allocation6], 0
    %13 = vsyncpa [#allocation4], 0
    // Predicated region
    $region2: #{feed_forward_network.1} parent=1 // pred_check
      _
    $region3: #{feed_forward_network.1} parent=1 // pred_check_branch
      %15 = sbr.rel (0) target = $region5
    $region4: #{feed_forward_network.1} parent=1 // pred_region
      %s17 = ssub.s32 128, 128
      %18 = vsyncadd [#allocation3], %s17
      %s20 = sshll.u32 [#allocation2], 4
      %s21 = int_to_ptr.vmem [resolvable:$true] %s20
      %23 = dma.hbm_to_vmem [thread:$0]  %s0, 128, %s21, [#allocation3]
    $region5: #{feed_forward_network.1} parent=1 // pred_fallthru
      _
    // Predicated region
    $region6: #{feed_forward_network.1} parent=1 // pred_check
      _
    $region7: #{feed_forward_network.1} parent=1 // pred_check_branch
      %25 = sbr.rel (0) target = $region9
    $region8: #{feed_forward_network.1} parent=1 // pred_region
      %s27 = ssub.s32 1024, 1024
      %28 = vsyncadd [#allocation6], %s27
      %s29 = sshll.u32 [#allocation5], 4
      %s30 = int_to_ptr.vmem [resolvable:$true] %s29
      %35 = dma.hbm_to_vmem [thread:$0]  %s1, 1024, %s30, [#allocation6], 128, 128, 8
    $region9: #{feed_forward_network.1} parent=1 // pred_fallthru
      _
    // Predicated region
    $region10: #{feed_forward_network.1} parent=1 // pred_check
      _
    $region11: #{feed_forward_network.1} parent=1 // pred_check_branch
      %37 = sbr.rel (0) target = $region13
    $region12: #{feed_forward_network.1} parent=1 // pred_region
      _
    $region13: #{feed_forward_network.1} parent=1 // pred_fallthru
      _
    // Predicated region
    $region14: #{feed_forward_network.1} parent=1 // pred_check
      _
    $region15: #{feed_forward_network.1} parent=1 // pred_check_branch
      %39 = sbr.rel (0) target = $region17
    $region16: #{feed_forward_network.1} parent=1 // pred_region
      _
    $region17: #{feed_forward_network.1} parent=1 // pred_fallthru
      _
    // Predicated region
    $region18: #{feed_forward_network.1} parent=1 // pred_check
      _
    $region19: #{feed_forward_network.1} parent=1 // pred_check_branch
      %41 = sbr.rel (0) target = $region21
    $region20: #{feed_forward_network.1} parent=1 // pred_region
      %s43 = ssub.s32 2048, 2048
      %44 = vsyncadd [#allocation6], %s43
      %s45 = sshll.u32 [#allocation7], 4
      %s46 = int_to_ptr.vmem [resolvable:$true] %s45
      %51 = dma.hbm_to_vmem [thread:$0]  %s4, 2048, %s46, [#allocation6], 128, 128, 8
    $region21: #{feed_forward_network.1} parent=1 // pred_fallthru
      _
    // Predicated region
    $region22: #{feed_forward_network.1} parent=1 // pred_check
      _
    $region23: #{feed_forward_network.1} parent=1 // pred_check_branch
      %53 = sbr.rel (0) target = $region25
    $region24: #{feed_forward_network.1} parent=1 // pred_region
      _
    $region25: #{feed_forward_network.1} parent=1 // pred_fallthru
      _
    // Predicated region
    $region26: #{feed_forward_network.1} parent=1 // pred_check
      _
    $region27: #{feed_forward_network.1} parent=1 // pred_check_branch
      %55 = sbr.rel (0) target = $region29
    $region28: #{feed_forward_network.1} parent=1 // pred_region
      %56 = dma.done [#allocation3], 128
    $region29: #{feed_forward_network.1} parent=1 // pred_fallthru
      _
    // Predicated region
    $region30: #{feed_forward_network.1} parent=1 // pred_check
      _
    $region31: #{feed_forward_network.1} parent=1 // pred_check_branch
      %58 = sbr.rel (0) target = $region33
    $region32: #{feed_forward_network.1} parent=1 // pred_region
      %59 = dma.done [#allocation6], 1024
    $region33: #{feed_forward_network.1} parent=1 // pred_fallthru
      _
    // Predicated region
    $region34: #{feed_forward_network.1} parent=1 // pred_check
      _
    $region35: #{feed_forward_network.1} parent=1 // pred_check_branch
      %61 = sbr.rel (0) target = $region37
    $region36: #{feed_forward_network.1} parent=1 // pred_region
      %62 = dma.done [#allocation6], 2048
    $region37: #{feed_forward_network.1} parent=1 // pred_fallthru
      _
    %v63 = vld [vmem:[#allocation2] sm:$0xff]
    %v64 = vld [vmem:[#allocation5] sm:$0xff]
    %v65 = vld [vmem:[#allocation5 + $0x8] sm:$0xff]
    %v66 = vld [vmem:[#allocation5 + $0x10] sm:$0xff]
    %v67 = vld [vmem:[#allocation5 + $0x18] sm:$0xff]
    %v68 = vld [vmem:[#allocation5 + $0x20] sm:$0xff]
    %v69 = vld [vmem:[#allocation5 + $0x28] sm:$0xff]
    %v70 = vld [vmem:[#allocation5 + $0x30] sm:$0xff]
    %v71 = vld [vmem:[#allocation5 + $0x38] sm:$0xff]
    %vm72 = vcmask 523264
    %v74 = vsel %vm72, %v63, 0
    %76 = vmatprep.subr.mxu0 0.0
    %77 = vmatpush1.msra.mxu0 0.0
    %78 = vmatprep.subr.mxu0 0.0
    %79 = vmatpush1.msra.mxu0 0.0
    %80 = vmatprep.subr.mxu0 0.0
    %81 = vmatpush1.msra.mxu0 0.0
    %82 = vmatprep.subr.mxu0 0.0
    %83 = vmatpush1.msra.mxu0 0.0
    %84 = vmatprep.subr.mxu0 0.0
    %85 = vmatpush1.msra.mxu0 0.0
    %86 = vmatprep.subr.mxu0 0.0
    %87 = vmatpush1.msra.mxu0 0.0
    %88 = vmatprep.subr.mxu0 0.0
    %89 = vmatpush1.msra.mxu0 0.0
    %90 = vmatprep.subr.mxu0 0.0
    %91 = vmatpush1.msra.mxu0 0.0
    %92 = vmatprep.subr.mxu0 0.0
    %93 = vmatpush1.msra.mxu0 %v71
    %94 = vmatprep.subr.mxu0 0.0
    %95 = vmatpush1.msra.mxu0 %v70
    %96 = vmatprep.subr.mxu0 0.0
    %97 = vmatpush1.msra.mxu0 %v69
    %98 = vmatprep.subr.mxu0 0.0
    %99 = vmatpush1.msra.mxu0 %v68
    %100 = vmatprep.subr.mxu0 0.0
    %101 = vmatpush1.msra.mxu0 %v67
    %102 = vmatprep.subr.mxu0 0.0
    %103 = vmatpush1.msra.mxu0 %v66
    %104 = vmatprep.subr.mxu0 0.0
    %105 = vmatpush1.msra.mxu0 %v65
    %106 = vmatprep.subr.mxu0 0.0
    %107 = vmatpush1.msra.mxu0 %v64
    %108 = vmatprep.subr.mxu0 0.0
    %109 = vmatpush2.msra.mxu0 0.0
    %110 = vmatprep.subr.mxu0 0.0
    %111 = vmatpush2.msra.mxu0 0.0
    %112 = vmatprep.subr.mxu0 0.0
    %113 = vmatpush2.msra.mxu0 0.0
    %114 = vmatprep.subr.mxu0 0.0
    %115 = vmatpush2.msra.mxu0 0.0
    %116 = vmatprep.subr.mxu0 0.0
    %117 = vmatpush2.msra.mxu0 0.0
    %118 = vmatprep.subr.mxu0 0.0
    %119 = vmatpush2.msra.mxu0 0.0
    %120 = vmatprep.subr.mxu0 0.0
    %121 = vmatpush2.msra.mxu0 0.0
    %122 = vmatprep.subr.mxu0 0.0
    %123 = vmatpush2.msra.mxu0 0.0
    %124 = vmatprep.subr.mxu0 0.0
    %125 = vmatpush2.msra.mxu0 0.0
    %126 = vmatprep.subr.mxu0 0.0
    %127 = vmatpush2.msra.mxu0 0.0
    %128 = vmatprep.subr.mxu0 0.0
    %129 = vmatpush2.msra.mxu0 0.0
    %130 = vmatprep.subr.mxu0 0.0
    %131 = vmatpush2.msra.mxu0 0.0
    %132 = vmatprep.subr.mxu0 0.0
    %133 = vmatpush2.msra.mxu0 0.0
    %134 = vmatprep.subr.mxu0 0.0
    %135 = vmatpush2.msra.mxu0 0.0
    %136 = vmatprep.subr.mxu0 0.0
    %137 = vmatpush2.msra.mxu0 0.0
    %138 = vmatprep.subr.mxu0 0.0
    %139 = vmatpush2.msra.mxu0 0.0
    %140 = vmatprep.mubr.f32.mxu0 0.0
    %141 = vmatmul.mubr.f32.gmra.mxu0 %v74
    %v142 = vpop.f32.mrf.mxu0
    %v143 = vadd.f32 0.0, %v142
    %v144 = vpop.f32.mrf.mxu0
    %145 = vdwg.mxu0
    %v146 = vrot.slane %v143, 4
    %v147 = vadd.f32 %v143, %v146
    %v148 = vrot.slane %v147, 2
    %v149 = vadd.f32 %v147, %v148
    %v150 = vrot.slane %v149, 1
    %v151 = vadd.f32 %v149, %v150
    %v152 = vrcp.pop 8.0
    %v153 = vmul.f32 %v151, %v152
    %v154 = vsub.f32 %v143, %v153
    %v155 = vmul.f32 %v154, %v154
    %v156 = vrot.slane %v155, 4
    %v157 = vadd.f32 %v155, %v156
    %v158 = vrot.slane %v157, 2
    %v159 = vadd.f32 %v157, %v158
    %v160 = vrot.slane %v159, 1
    %v161 = vadd.f32 %v159, %v160
    %v162 = vmul.f32 %v161, %v152
    %v163 = vld [vmem:[%s2] sm:$0x1]
    %v164 = vadd.f32 %v162, 1e-05
    %v165 = vrsqrt.pop %v164
    %v166 = vmul.f32 %v163, %v165
    %v168 = vlaneseq
    %v169 = vshrl.u32 %v168, 7
    %v170 = vsub.s32 0, %v169
    %v171 = vrot.slane %v166, %v170
    %v173 = vmul.f32 %v154, %v171
    %v174 = vld [vmem:[%s3] sm:$0x1]
    %v176 = vlaneseq
    %v177 = vshrl.u32 %v176, 7
    %v178 = vsub.s32 0, %v177
    %v179 = vrot.slane %v174, %v178
    %v181 = vadd.f32 %v173, %v179
    %v182 = vmax.f32 %v181, 0.0
    %v183 = vld [vmem:[#allocation7] sm:$0xff]
    %v184 = vld [vmem:[#allocation7 + $0x8] sm:$0xff]
    %v185 = vld [vmem:[#allocation7 + $0x10] sm:$0xff]
    %v186 = vld [vmem:[#allocation7 + $0x18] sm:$0xff]
    %v187 = vld [vmem:[#allocation7 + $0x20] sm:$0xff]
    %v188 = vld [vmem:[#allocation7 + $0x28] sm:$0xff]
    %v189 = vld [vmem:[#allocation7 + $0x30] sm:$0xff]
    %v190 = vld [vmem:[#allocation7 + $0x38] sm:$0xff]
    %v191 = vld [vmem:[#allocation7 + $0x40] sm:$0xff]
    %v192 = vld [vmem:[#allocation7 + $0x48] sm:$0xff]
    %v193 = vld [vmem:[#allocation7 + $0x50] sm:$0xff]
    %v194 = vld [vmem:[#allocation7 + $0x58] sm:$0xff]
    %v195 = vld [vmem:[#allocation7 + $0x60] sm:$0xff]
    %v196 = vld [vmem:[#allocation7 + $0x68] sm:$0xff]
    %v197 = vld [vmem:[#allocation7 + $0x70] sm:$0xff]
    %v198 = vld [vmem:[#allocation7 + $0x78] sm:$0xff]
    %v199 = vld [vmem:[%s5] sm:$0x1]
    %v201 = vlaneseq
    %v202 = vshrl.u32 %v201, 7
    %v203 = vsub.s32 0, %v202
    %v204 = vrot.slane %v199, %v203
    %206 = vmatprep.subr.mxu0 0.0
    %207 = vmatpush1.msra.mxu0 %v198
    %208 = vmatprep.subr.mxu0 0.0
    %209 = vmatpush1.msra.mxu0 %v197
    %210 = vmatprep.subr.mxu0 0.0
    %211 = vmatpush1.msra.mxu0 %v196
    %212 = vmatprep.subr.mxu0 0.0
    %213 = vmatpush1.msra.mxu0 %v195
    %214 = vmatprep.subr.mxu0 0.0
    %215 = vmatpush1.msra.mxu0 %v194
    %216 = vmatprep.subr.mxu0 0.0
    %217 = vmatpush1.msra.mxu0 %v193
    %218 = vmatprep.subr.mxu0 0.0
    %219 = vmatpush1.msra.mxu0 %v192
    %220 = vmatprep.subr.mxu0 0.0
    %221 = vmatpush1.msra.mxu0 %v191
    %222 = vmatprep.subr.mxu0 0.0
    %223 = vmatpush1.msra.mxu0 %v190
    %224 = vmatprep.subr.mxu0 0.0
    %225 = vmatpush1.msra.mxu0 %v189
    %226 = vmatprep.subr.mxu0 0.0
    %227 = vmatpush1.msra.mxu0 %v188
    %228 = vmatprep.subr.mxu0 0.0
    %229 = vmatpush1.msra.mxu0 %v187
    %230 = vmatprep.subr.mxu0 0.0
    %231 = vmatpush1.msra.mxu0 %v186
    %232 = vmatprep.subr.mxu0 0.0
    %233 = vmatpush1.msra.mxu0 %v185
    %234 = vmatprep.subr.mxu0 0.0
    %235 = vmatpush1.msra.mxu0 %v184
    %236 = vmatprep.subr.mxu0 0.0
    %237 = vmatpush1.msra.mxu0 %v183
    %238 = vmatprep.subr.mxu0 0.0
    %239 = vmatpush2.msra.mxu0 0.0
    %240 = vmatprep.subr.mxu0 0.0
    %241 = vmatpush2.msra.mxu0 0.0
    %242 = vmatprep.subr.mxu0 0.0
    %243 = vmatpush2.msra.mxu0 0.0
    %244 = vmatprep.subr.mxu0 0.0
    %245 = vmatpush2.msra.mxu0 0.0
    %246 = vmatprep.subr.mxu0 0.0
    %247 = vmatpush2.msra.mxu0 0.0
    %248 = vmatprep.subr.mxu0 0.0
    %249 = vmatpush2.msra.mxu0 0.0
    %250 = vmatprep.subr.mxu0 0.0
    %251 = vmatpush2.msra.mxu0 0.0
    %252 = vmatprep.subr.mxu0 0.0
    %253 = vmatpush2.msra.mxu0 0.0
    %254 = vmatprep.subr.mxu0 0.0
    %255 = vmatpush2.msra.mxu0 0.0
    %256 = vmatprep.subr.mxu0 0.0
    %257 = vmatpush2.msra.mxu0 0.0
    %258 = vmatprep.subr.mxu0 0.0
    %259 = vmatpush2.msra.mxu0 0.0
    %260 = vmatprep.subr.mxu0 0.0
    %261 = vmatpush2.msra.mxu0 0.0
    %262 = vmatprep.subr.mxu0 0.0
    %263 = vmatpush2.msra.mxu0 0.0
    %264 = vmatprep.subr.mxu0 0.0
    %265 = vmatpush2.msra.mxu0 0.0
    %266 = vmatprep.subr.mxu0 0.0
    %267 = vmatpush2.msra.mxu0 0.0
    %268 = vmatprep.subr.mxu0 0.0
    %269 = vmatpush2.msra.mxu0 0.0
    %270 = vmatprep.mubr.f32.mxu0 0.0
    %271 = vmatmul.mubr.f32.gmra.mxu0 %v182
    %v272 = vpop.f32.mrf.mxu0
    %v273 = vadd.f32 %v204, %v272
    %v274 = vpop.f32.mrf.mxu0
    %275 = vdwg.mxu0
    %276 = vmax.xlane.f32.xlu0 %v273
    %v277 = vpop.xlane.xlu0 %276
    %v278 = vsub.f32 %v273, %v277
    %v279 = vmul.f32 %v278, 1.442695
    %v280 = vpow.pop %v279
    %281 = vadd.xlane.f32.xlu0 %v280
    %v282 = vpop.xlane.xlu0 %281
    %v283 = vlog2.pop %v282
    %v284 = vmul.f32 %v283, 0.6931472
    %v285 = vadd.f32 %v284, %v277
    %v286 = vsub.f32 %v273, %v285
    %287 = vst [vmem:[#allocation8] sm:$0xff] %v286
    // Predicated region
    $region38: #{feed_forward_network.1} parent=1 // pred_check
      _
    $region39: #{feed_forward_network.1} parent=1 // pred_check_branch
      %289 = sbr.rel (0) target = $region41
    $region40: #{feed_forward_network.1} parent=1 // pred_region
      %s291 = ssub.s32 128, 128
      %292 = vsyncadd [#allocation4], %s291
      %s294 = sshll.u32 [#allocation8], 4
      %s295 = int_to_ptr.vmem [resolvable:$true] %s294
      %297 = dma.vmem_to_hbm [thread:$0]  %s295, 128, %s6, [#allocation4]
    $region41: #{feed_forward_network.1} parent=1 // pred_fallthru
      _
    // Predicated region
    $region42: #{feed_forward_network.1} parent=1 // pred_check
      _
    $region43: #{feed_forward_network.1} parent=1 // pred_check_branch
      %299 = sbr.rel (0) target = $region45
    $region44: #{feed_forward_network.1} parent=1 // pred_region
      %300 = dma.done [#allocation4], 128
    $region45: #{feed_forward_network.1} parent=1 // pred_fallthru
      _
    %301 = vsyncpa [#allocation3], 1
    %302 = vsyncpa [#allocation6], 1
    %303 = vsyncpa [#allocation4], 1

</llo_original>
